<compile_context>
chip_gen: v7x
topology: tpu7x:2x2x1
jax: 0.10.0
libtpu: 0.0.40
codegen_flags: <defaults>
</compile_context>

<pallas_src>
import math
import numpy as np
import jax
import jax.numpy as jnp
from jax.experimental import pallas as pl
from jax.experimental.pallas import tpu as pltpu

# ---- sizes for the chosen irreps ------------------------------------------
MUL_S = 8                       # multiplicity of 0e (scalars)
MUL_V = 8                       # multiplicity of 1o (vectors)
DIM_V = 3                       # 2l+1 for l=1
DIN   = MUL_S + MUL_V * DIM_V   # 32
DOUT  = MUL_S + MUL_V * DIM_V   # 32
PACK  = 4                       # logical rows packed per 128-lane vreg row
LANES = PACK * DIN              # 128 (== PACK * DOUT)
WCOLS = 2 * LANES               # 256: [output layout (128) | broadcast gates (128)]
SQRT2 = math.sqrt(2.0)          # normalize2mom factor for ReLU


def _o3_gated_linear_kernel(x_ref, w_ref, m_ref, o_ref):
    """One row-tile of the fused o3.Linear + Gate (4 logical rows per vreg row).

    x_ref : (TR, 128)  packed inputs: 4 logical rows x [8x0e | 8x1o (mul-major)]
    w_ref : (128, 256) fused linear:
                        cols   0..127 -> output layout [scalars(8)|vectors(24)] x4
                                         (sqrt2 folded into scalar columns)
                        cols 128..255 -> gate values pre-broadcast onto the
                                         vector lanes (sqrt2 folded), 0 elsewhere
    m_ref : (1, 128)   1.0 on scalar lanes of each 32-wide group, 0.0 elsewhere
    o_ref : (TR, 128)  packed outputs: 4 logical rows x [scalars(8)|gated vec(24)]
    """
    y = jnp.dot(x_ref[...], w_ref[...], preferred_element_type=jnp.float32)  # (TR, 256)
    y_out = y[:, :LANES]                          # (TR, 128) linear outputs
    gate = jnp.maximum(y[:, LANES:], 0.0)         # (TR, 128) gates, already broadcast
    is_scalar = m_ref[...] != 0.0                 # (1, 128), broadcasts over rows
    o_ref[...] = jnp.where(is_scalar,
                           jnp.maximum(y_out, 0.0),      # relu (sqrt2 pre-folded)
                           y_out * gate).astype(o_ref.dtype)


def pack_o3_gated_linear_params(w_s, w_g, w_v):
    """Pack the equivariant weights once (outside the per-call path).

    w_s, w_g: (8, 8) scalar->scalar / scalar->gate weights.
    w_v     : (8, 8) vector-mul -> vector-mul weights.
    Returns (W, mask) with W: (128, 256) f32, mask: (1, 128) f32.
    """
    w_s = np.asarray(w_s, np.float32)
    w_g = np.asarray(w_g, np.float32)
    w_v = np.asarray(w_v, np.float32)
    norm = 1.0 / math.sqrt(MUL_S)   # fan_in of every path here is 8

    # per-group 32 -> 32 block producing [scalars(8) | vectors(24)]
    blk_out = np.zeros((DIN, DOUT), np.float32)
    blk_out[:MUL_S, :MUL_S] = w_s * (norm * SQRT2)          # sqrt2 folded (relu scalars)
    eye3 = np.eye(DIM_V, dtype=np.float32)
    blk_out[MUL_S:, MUL_S:] = np.einsum(
        "io,cd->icod", w_v * norm, eye3).reshape(MUL_V * DIM_V, MUL_V * DIM_V)

    # per-group 32 -> 32 block producing the gates, pre-broadcast to the 3
    # vector lanes of each gated multiplicity (sqrt2 folded: relu(s*z)=s*relu(z))
    blk_gate = np.zeros((DIN, DOUT), np.float32)
    for m in range(MUL_V):
        for c in range(DIM_V):
            blk_gate[:MUL_S, MUL_S + DIM_V * m + c] = w_g[:, m] * (norm * SQRT2)

    W = np.zeros((LANES, WCOLS), np.float32)
    for g in range(PACK):
        r0 = g * DIN
        W[r0:r0 + DIN, g * DOUT:(g + 1) * DOUT] = blk_out
        W[r0:r0 + DIN, LANES + g * DOUT:LANES + (g + 1) * DOUT] = blk_gate

    mask = np.zeros((1, LANES), np.float32)
    for g in range(PACK):
        mask[0, g * DOUT:g * DOUT + MUL_S] = 1.0

    return jnp.asarray(W), jnp.asarray(mask)


def o3_gated_linear(x, W, scalar_mask, *, tile_rows=2048):
    """x: (N, 32) float32.  W, scalar_mask: packed params (pack once, reuse)."""
    N, din = x.shape
    assert din == DIN

    rows = pl.cdiv(N, PACK)                     # packed rows
    n_pad = rows * PACK - N                     # pad only to a multiple of PACK
    x_p = jnp.pad(x, ((0, n_pad), (0, 0))) if n_pad else x
    x_packed = x_p.reshape(rows, LANES)         # 4 logical rows per 128-lane row

    # tile height: multiple of 8 sublanes; capped at ~half the rows so the grid
    # has >= 2 steps whenever possible (v7x: 2 TensorCores on the parallel axis)
    half = -(-pl.cdiv(rows, 2) // 8) * 8
    tr = max(8, min(tile_rows, half))
    grid = pl.cdiv(rows, tr)                    # ragged last block is fine:
                                                # rows are independent, writes masked
    out = pl.pallas_call(
        _o3_gated_linear_kernel,
        out_shape=jax.ShapeDtypeStruct((rows, LANES), jnp.float32),
        grid_spec=pltpu.PrefetchScalarGridSpec(
            num_scalar_prefetch=0,
            grid=(grid,),
            in_specs=[
                pl.BlockSpec((tr, LANES), lambda i: (i, 0)),
                pl.BlockSpec((LANES, WCOLS), lambda i: (0, 0)),
                pl.BlockSpec((1, LANES), lambda i: (0, 0)),
            ],
            out_specs=pl.BlockSpec((tr, LANES), lambda i: (i, 0)),
        ),
        compiler_params=pltpu.CompilerParams(
            dimension_semantics=("parallel",),
            vmem_limit_bytes=32 * 1024 * 1024),
    )(x_packed, W, scalar_mask)

    out_rows = out.reshape(rows * PACK, DOUT)
    return out_rows if n_pad == 0 else out_rows[:N]


def o3_gated_linear_ref(x, w_s, w_g, w_v):
    """Pure-JAX reference of the same forward."""
    norm = 1.0 / math.sqrt(MUL_S)
    xs = x[:, :MUL_S]                                   # (N, 8)
    xv = x[:, MUL_S:].reshape(-1, MUL_V, DIM_V)         # (N, 8, 3) mul-major
    ys = xs @ (w_s * norm)                              # -> output scalars
    yg = xs @ (w_g * norm)                              # -> gates
    yv = jnp.einsum("nic,io->noc", xv, w_v * norm)      # -> gated vectors
    s_act = jnp.maximum(ys, 0.0) * SQRT2
    g_act = jnp.maximum(yg, 0.0) * SQRT2
    gated = yv * g_act[:, :, None]
    return jnp.concatenate([s_act, gated.reshape(-1, MUL_V * DIM_V)], axis=-1)


if __name__ == "__main__":
    key = jax.random.PRNGKey(0)
    kx, k1, k2, k3 = jax.random.split(key, 4)
    N = 50                                        # not a multiple of 4: exercises padding + ragged last block
    x = jax.random.normal(kx, (N, DIN), jnp.float32)
    w_s = jax.random.normal(k1, (MUL_S, MUL_S), jnp.float32)
    w_g = jax.random.normal(k2, (MUL_S, MUL_S), jnp.float32)
    w_v = jax.random.normal(k3, (MUL_V, MUL_V), jnp.float32)

    # Pack weights ONCE (module/param-init time), reuse across calls.
    W, mask = pack_o3_gated_linear_params(w_s, w_g, w_v)

    out = jax.block_until_ready(o3_gated_linear(x, W, mask))
    ref = o3_gated_linear_ref(x, w_s, w_g, w_v)

    assert out.shape == (N, DOUT)
    assert jnp.allclose(out, ref, atol=1e-5, rtol=1e-5)
    print("KERNEL_OK")
</pallas_src>

<mosaic_0001>
module attributes {stable_mosaic.version = 11 : i64} {
  func.func @_o3_gated_linear_kernel(%arg0: i32, %arg1: memref<8x128xf32, #tpu.memory_space<vmem>>, %arg2: memref<128x256xf32, #tpu.memory_space<vmem>>, %arg3: memref<1x128xf32, #tpu.memory_space<vmem>>, %arg4: memref<8x128xf32, #tpu.memory_space<vmem>>) attributes {dimension_semantics = [#tpu.dimension_semantics<parallel>], iteration_bounds = array<i64: 2>, scalar_prefetch = 0 : i64, scratch_operands = 0 : i64, tpu.core_type = #tpu.core_type<tc>, window_params = [{transform_indices = @transform_0, window_bounds = array<i64: 8, 128>}, {pipeline_mode = #tpu.pipeline_mode<synchronous>, transform_indices = @transform_1, window_bounds = array<i64: 128, 256>}, {pipeline_mode = #tpu.pipeline_mode<synchronous>, transform_indices = @transform_2, window_bounds = array<i64: 1, 128>}, {transform_indices = @transform_3, window_bounds = array<i64: 8, 128>}]} {
    %c0 = arith.constant 0 : index
    %c0_0 = arith.constant 0 : index
    %0 = vector.load %arg1[%c0, %c0_0] : memref<8x128xf32, #tpu.memory_space<vmem>>, vector<8x128xf32>
    %c0_1 = arith.constant 0 : index
    %c0_2 = arith.constant 0 : index
    %1 = vector.load %arg2[%c0_1, %c0_2] : memref<128x256xf32, #tpu.memory_space<vmem>>, vector<128x256xf32>
    %cst = arith.constant dense<0.000000e+00> : vector<8x256xf32>
    %2 = tpu.matmul %0, %1, %cst {dimension_numbers = #tpu.dot_dimension_numbers<[1], [0], [0], [1], [0, 0, 1, 1], [], []>} : vector<8x128xf32>, vector<128x256xf32>, vector<8x256xf32> -> vector<8x256xf32>
    %3 = vector.extract_strided_slice %2 {offsets = [0, 0], sizes = [8, 128], strides = [1, 1]} : vector<8x256xf32> to vector<8x128xf32>
    %4 = vector.extract_strided_slice %2 {offsets = [0, 128], sizes = [8, 128], strides = [1, 1]} : vector<8x256xf32> to vector<8x128xf32>
    %cst_3 = arith.constant 0.000000e+00 : f32
    %5 = vector.broadcast %cst_3 : f32 to vector<8x128xf32>
    %6 = arith.maximumf %4, %5 : vector<8x128xf32>
    %c0_4 = arith.constant 0 : index
    %c0_5 = arith.constant 0 : index
    %7 = vector.load %arg3[%c0_4, %c0_5] : memref<1x128xf32, #tpu.memory_space<vmem>>, vector<1x128xf32>
    %cst_6 = arith.constant 0.000000e+00 : f32
    %8 = vector.broadcast %cst_6 : f32 to vector<1x128xf32>
    %9 = arith.cmpf one, %7, %8 : vector<1x128xf32>
    %cst_7 = arith.constant 0.000000e+00 : f32
    %10 = vector.broadcast %cst_7 : f32 to vector<8x128xf32>
    %11 = arith.maximumf %3, %10 : vector<8x128xf32>
    %12 = arith.mulf %3, %6 : vector<8x128xf32>
    %13 = vector.shape_cast %9 : vector<1x128xi1> to vector<1x128xi1>
    %14 = vector.broadcast %13 : vector<1x128xi1> to vector<8x128xi1>
    %15 = arith.select %14, %11, %12 : vector<8x128xi1>, vector<8x128xf32>
    %c0_8 = arith.constant 0 : index
    %c0_9 = arith.constant 0 : index
    %16 = vector.load %arg4[%c0_8, %c0_9] : memref<8x128xf32, #tpu.memory_space<vmem>>, vector<8x128xf32>
    tpu.vector_store %arg4[%c0_8, %c0_9], %15 {strides = array<i32>} : memref<8x128xf32, #tpu.memory_space<vmem>>, vector<8x128xf32>,
    return
  }
  func.func @transform_0(%arg0: i32) -> (i32, i32) {
    %c0_i32 = arith.constant 0 : i32
    %c0_i32_0 = arith.constant 0 : i32
    return %arg0, %c0_i32 : i32, i32
  }
  func.func @transform_1(%arg0: i32) -> (i32, i32) {
    %c0_i32 = arith.constant 0 : i32
    %c0_i32_0 = arith.constant 0 : i32
    %c0_i32_1 = arith.constant 0 : i32
    return %c0_i32, %c0_i32_0 : i32, i32
  }
  func.func @transform_2(%arg0: i32) -> (i32, i32) {
    %c0_i32 = arith.constant 0 : i32
    %c0_i32_0 = arith.constant 0 : i32
    %c0_i32_1 = arith.constant 0 : i32
    return %c0_i32, %c0_i32_0 : i32, i32
  }
  func.func @transform_3(%arg0: i32) -> (i32, i32) {
    %c0_i32 = arith.constant 0 : i32
    %c0_i32_0 = arith.constant 0 : i32
    return %arg0, %c0_i32 : i32, i32
  }
}

</mosaic_0001>

<llo_original>
// kernel: tpu_custom_call.1
$region0: #{tpu_custom_call.1}
  #allocation0 [shape = 'u32[]', space=smem, size = 0x4, offset = 0x4, fixed_abs, tag = 'smem constant byte address 0x4 - core index']
  #allocation1 [shape = 'u32[144,128]{1,0:T(1,128)}', space=vmem, size = 0x12000, scoped, tag = 'internal scratch']
  %s0 = inlined_call_operand.hbm [shape: f32[13,128], index: 0, kind: input, shape index: {}]
  %s1 = inlined_call_operand.hbm [shape: f32[128,256], index: 1, kind: input, shape index: {}]
  %s2 = inlined_call_operand.vmem [shape: f32[1,128], index: 2, kind: input, shape index: {}]
  %s3 = inlined_call_operand.hbm [shape: f32[13,128], index: 3, kind: output, shape index: {}]
  %s4 = sld [smem:[#allocation0]]
  $region53: #{tpu_custom_call.1} parent=0
    _
  %s6 = ssub.s32 1, %s4
  %s7 = scalar_select 0, %s6, %s4
  $region1: #{tpu_custom_call.1} parent=0
    #allocation2 [shape = 'u8[8192]{0}', space=vmem, size = 0x2000, scoped, tag = 'input window, operand 0']
    #allocation3 [shape = 's32[2]{0}', space=sflag, size = 0x8, scoped, tag = 'scoped memory for tpu_custom_call.1']
    #allocation4 [shape = 's32[2]{0}', space=sflag, size = 0x8, scoped, tag = 'scoped memory for tpu_custom_call.1']
    #allocation5 [shape = 'u8[131072]{0}', space=vmem, size = 0x20000, scoped, tag = 'input window, operand 1, single buffered']
    #allocation6 [shape = 's32[1]{0}', space=sflag, size = 0x4, scoped, tag = 'scoped memory for tpu_custom_call.1']
    #allocation7 [shape = 'u8[8192]{0}', space=vmem, size = 0x2000, scoped, tag = 'output window, operand 0']
    %8 = vsyncpa [#allocation3], 0
    %s9 = scalar_lea.sflag [#allocation3], 1
    %10 = vsyncpa %s9, 0
    %11 = vsyncpa [#allocation6], 0
    %12 = vsyncpa [#allocation4], 0
    %s13 = scalar_lea.sflag [#allocation4], 1
    %14 = vsyncpa %s13, 0
    loop: start=0, step=1, limit=4
    $region2: #{tpu_custom_call.1} parent=1 // loop_pre_header
      _
    $region3: #{tpu_custom_call.1} parent=1 // loop_header
      %s16 = sphi 0, %s20
      %p17 = scmp.ge.s32.totalorder %s16, 4
      %s26 = sphi 0, %s28
      %s29 = sphi 0, %s26
      %s30 = sphi 0, %s29
      %s46 = sphi 0, %s30
      %s50 = sphi 0, %s50
      %s52 = sphi 0, %s50
      %s53 = sphi 0, %s52
      %s67 = sphi 0, %s53
      %s71 = sphi 0, %s71
      %s73 = sphi 0, %s71
      %s74 = sphi 0, %s73
      %s88 = sphi 0, %s74
      %s94 = sphi 0, %s96
      %s97 = sphi 0, %s94
      %s98 = sphi 0, %s97
      %s114 = sphi 0, %s98
    $region4: #{tpu_custom_call.1} parent=1 // loop_header_branch
      %19 = sbr.rel (%p17) target = $region8
    $region5: #{tpu_custom_call.1} parent=1 // loop_body
      %s21 = ssub.s32 %s16, 1
      %s22 = ssub.s32 %s16, 2
      %s23 = sadd.s32 %s16, 1
      %s24 = ssub.s32 %s16, %s23
      %p25 = scmp.eq.s32.totalorder %s24, 0
      %s27 = sadd.s32 %s26, 1
      %s28 = scalar_select %p25, %s26, %s27
      %p31 = pneg %p25
      %p32 = scmp.eq.s32.totalorder %s16, 1
      %p33 = por %p31, %p32
      %p34 = scmp.ne.s32.totalorder %s26, %s29
      %p35 = scmp.eq.s32.totalorder %s16, 0
      %p36 = por %p34, %p35
      %p37 = scmp.ne.s32.totalorder %s26, %s29
      %p38 = scmp.eq.s32.totalorder %s21, 1
      %p39 = por %p37, %p38
      %p40 = scmp.ne.s32.totalorder %s29, %s30
      %p41 = scmp.eq.s32.totalorder %s21, 0
      %p42 = por %p40, %p41
      %p43 = scmp.ne.s32.totalorder %s29, %s30
      %p44 = scmp.eq.s32.totalorder %s22, 1
      %p45 = por %p43, %p44
      %p47 = scmp.ne.s32.totalorder %s30, %s46
      %p48 = scmp.eq.s32.totalorder %s22, 0
      %p49 = por %p47, %p48
      %s51 = sadd.s32 %s50, 1
      %p54 = scmp.eq.s32.totalorder %s16, 1
      %p55 = scmp.ne.s32.totalorder %s50, %s52
      %p56 = scmp.eq.s32.totalorder %s16, 0
      %p57 = por %p55, %p56
      %p58 = scmp.ne.s32.totalorder %s50, %s52
      %p59 = scmp.eq.s32.totalorder %s21, 1
      %p60 = por %p58, %p59
      %p61 = scmp.ne.s32.totalorder %s52, %s53
      %p62 = scmp.eq.s32.totalorder %s21, 0
      %p63 = por %p61, %p62
      %p64 = scmp.ne.s32.totalorder %s52, %s53
      %p65 = scmp.eq.s32.totalorder %s22, 1
      %p66 = por %p64, %p65
      %p68 = scmp.ne.s32.totalorder %s53, %s67
      %p69 = scmp.eq.s32.totalorder %s22, 0
      %p70 = por %p68, %p69
      %s72 = sadd.s32 %s71, 1
      %p75 = scmp.eq.s32.totalorder %s16, 1
      %p76 = scmp.ne.s32.totalorder %s71, %s73
      %p77 = scmp.eq.s32.totalorder %s16, 0
      %p78 = por %p76, %p77
      %p79 = scmp.ne.s32.totalorder %s71, %s73
      %p80 = scmp.eq.s32.totalorder %s21, 1
      %p81 = por %p79, %p80
      %p82 = scmp.ne.s32.totalorder %s73, %s74
      %p83 = scmp.eq.s32.totalorder %s21, 0
      %p84 = por %p82, %p83
      %p85 = scmp.ne.s32.totalorder %s73, %s74
      %p86 = scmp.eq.s32.totalorder %s22, 1
      %p87 = por %p85, %p86
      %p89 = scmp.ne.s32.totalorder %s74, %s88
      %p90 = scmp.eq.s32.totalorder %s22, 0
      %p91 = por %p89, %p90
      %s92 = ssub.s32 %s16, %s23
      %p93 = scmp.eq.s32.totalorder %s92, 0
      %s95 = sadd.s32 %s94, 1
      %s96 = scalar_select %p93, %s94, %s95
      %p99 = pneg %p93
      %p100 = scmp.eq.s32.totalorder %s16, 1
      %p101 = por %p99, %p100
      %p102 = scmp.ne.s32.totalorder %s94, %s97
      %p103 = scmp.eq.s32.totalorder %s16, 0
      %p104 = por %p102, %p103
      %p105 = scmp.ne.s32.totalorder %s94, %s97
      %p106 = scmp.eq.s32.totalorder %s21, 1
      %p107 = por %p105, %p106
      %p108 = scmp.ne.s32.totalorder %s97, %s98
      %p109 = scmp.eq.s32.totalorder %s21, 0
      %p110 = por %p108, %p109
      %p111 = scmp.ne.s32.totalorder %s97, %s98
      %p112 = scmp.eq.s32.totalorder %s22, 1
      %p113 = por %p111, %p112
      %p115 = scmp.ne.s32.totalorder %s98, %s114
      %p116 = scmp.eq.s32.totalorder %s22, 0
      %p117 = por %p115, %p116
      %p118 = scmp.le.s32.totalorder 1, %s16
      %p119 = scmp.lt.s32.totalorder %s16, 3
      %p120 = pnand %p118, %p119
      %p121 = pneg %p120
      // Predicated region
      $region9: #{tpu_custom_call.1} parent=5 // pred_check
        _
      $region10: #{tpu_custom_call.1} parent=5 // pred_check_branch
        %123 = sbr.rel (%p120) target = $region12
      $region11: #{tpu_custom_call.1} parent=5 // pred_region
        %s124 = ssub.s32 %s16, 1
        // Predicated region
        $region13: #{tpu_custom_call.1} parent=11 // pred_check
          %p125 = pneg %p63
        $region14: #{tpu_custom_call.1} parent=11 // pred_check_branch
          %127 = sbr.rel (%p125) target = $region16
        $region15: #{tpu_custom_call.1} parent=11 // pred_region
          %s129 = ssub.s32 4096, 4096
          %130 = vsyncadd [#allocation6], %s129
          %s131 = sshll.u32 [#allocation5], 4
          %s132 = int_to_ptr.vmem [resolvable:$true] %s131
          %137 = dma.hbm_to_vmem [thread:$0]  %s1, 4096, %s132, [#allocation6], 256, 256, 16
        $region16: #{tpu_custom_call.1} parent=11 // pred_fallthru
          _
        // Predicated region
        $region17: #{tpu_custom_call.1} parent=11 // pred_check
          %p138 = pneg %p84
        $region18: #{tpu_custom_call.1} parent=11 // pred_check_branch
          %140 = sbr.rel (%p138) target = $region20
        $region19: #{tpu_custom_call.1} parent=11 // pred_region
          _
        $region20: #{tpu_custom_call.1} parent=11 // pred_fallthru
          _
      $region12: #{tpu_custom_call.1} parent=5 // pred_fallthru
        _
      %p141 = scmp.lt.s32.totalorder %s16, 2
      // Predicated region
      $region21: #{tpu_custom_call.1} parent=5 // pred_check
        %p142 = pneg %p141
      $region22: #{tpu_custom_call.1} parent=5 // pred_check_branch
        %144 = sbr.rel (%p142) target = $region24
      $region23: #{tpu_custom_call.1} parent=5 // pred_region
        // Predicated region
        $region25: #{tpu_custom_call.1} parent=23 // pred_check
          %p145 = pneg %p36
        $region26: #{tpu_custom_call.1} parent=23 // pred_check_branch
          %147 = sbr.rel (%p145) target = $region28
        $region27: #{tpu_custom_call.1} parent=23 // pred_region
          %s148 = sand.u32 %s26, 1
          %s149 = scalar_lea.sflag [#allocation3], %s148
          %s150 = sand.u32 %s26, 1
          %s151 = smul.addr %s150, 8
          %s152 = scalar_lea.vmem [#allocation2], %s151
          %s154 = ssub.s32 128, 128
          %155 = vsyncadd %s149, %s154
          %s156 = smul.addr %s16, 128
          %s157 = scalar_lea.hbm %s0, %s156
          %s159 = sshll.u32 %s152, 4
          %s160 = int_to_ptr.vmem [resolvable:$true] %s159
          %162 = dma.hbm_to_vmem [thread:$0]  %s157, 128, %s160, %s149
        $region28: #{tpu_custom_call.1} parent=23 // pred_fallthru
          _
      $region24: #{tpu_custom_call.1} parent=5 // pred_fallthru
        _
      %p163 = scmp.le.s32.totalorder 1, %s16
      %p164 = scmp.lt.s32.totalorder %s16, 3
      %p165 = pnand %p163, %p164
      %p166 = pneg %p165
      // Predicated region
      $region29: #{tpu_custom_call.1} parent=5 // pred_check
        _
      $region30: #{tpu_custom_call.1} parent=5 // pred_check_branch
        %168 = sbr.rel (%p165) target = $region32
      $region31: #{tpu_custom_call.1} parent=5 // pred_region
        %s169 = ssub.s32 %s16, 1
        %s170 = sand.u32 %s29, 1
        %s171 = scalar_lea.sflag [#allocation3], %s170
        %s172 = sand.u32 %s29, 1
        %s173 = smul.addr %s172, 8
        %s174 = scalar_lea.vmem [#allocation2], %s173
        // Predicated region
        $region33: #{tpu_custom_call.1} parent=31 // pred_check
          %p175 = pneg %p42
        $region34: #{tpu_custom_call.1} parent=31 // pred_check_branch
          %177 = sbr.rel (%p175) target = $region36
        $region35: #{tpu_custom_call.1} parent=31 // pred_region
          %178 = dma.done %s171, 128
        $region36: #{tpu_custom_call.1} parent=31 // pred_fallthru
          _
        // Predicated region
        $region37: #{tpu_custom_call.1} parent=31 // pred_check
          %p179 = pneg %p63
        $region38: #{tpu_custom_call.1} parent=31 // pred_check_branch
          %181 = sbr.rel (%p179) target = $region40
        $region39: #{tpu_custom_call.1} parent=31 // pred_region
          %182 = dma.done [#allocation6], 4096
        $region40: #{tpu_custom_call.1} parent=31 // pred_fallthru
          _
        %s183 = sand.u32 %s29, 1
        %s184 = scalar_lea.sflag [#allocation3], %s183
        %s185 = sand.u32 %s29, 1
        %s186 = smul.addr %s185, 8
        %s187 = scalar_lea.vmem [#allocation2], %s186
        %p188 = pneg %p42
        %p189 = pneg %p39
        %p190 = pneg %p63
        %p191 = pneg %p60
        %p192 = pneg %p84
        %p193 = pneg %p81
        %p194 = pneg %p110
        %p195 = pneg %p107
        %s196 = sand.u32 %s97, 1
        %s197 = scalar_lea.sflag [#allocation4], %s196
        %s198 = sand.u32 %s97, 1
        %s199 = smul.addr %s198, 8
        %s200 = scalar_lea.vmem [#allocation7], %s199
        %v201 = vld [vmem:[%s174] sm:$0xff]
        %v202 = vld [vmem:[#allocation5] sm:$0xff]
        %v203 = vld [vmem:[#allocation5 + $0x8] sm:$0xff]
        %v204 = vld [vmem:[#allocation5 + $0x10] sm:$0xff]
        %v205 = vld [vmem:[#allocation5 + $0x18] sm:$0xff]
        %v206 = vld [vmem:[#allocation5 + $0x20] sm:$0xff]
        %v207 = vld [vmem:[#allocation5 + $0x28] sm:$0xff]
        %v208 = vld [vmem:[#allocation5 + $0x30] sm:$0xff]
        %v209 = vld [vmem:[#allocation5 + $0x38] sm:$0xff]
        %v210 = vld [vmem:[#allocation5 + $0x40] sm:$0xff]
        %v211 = vld [vmem:[#allocation5 + $0x48] sm:$0xff]
        %v212 = vld [vmem:[#allocation5 + $0x50] sm:$0xff]
        %v213 = vld [vmem:[#allocation5 + $0x58] sm:$0xff]
        %v214 = vld [vmem:[#allocation5 + $0x60] sm:$0xff]
        %v215 = vld [vmem:[#allocation5 + $0x68] sm:$0xff]
        %v216 = vld [vmem:[#allocation5 + $0x70] sm:$0xff]
        %v217 = vld [vmem:[#allocation5 + $0x78] sm:$0xff]
        %v218 = vld [vmem:[#allocation5 + $0x80] sm:$0xff]
        %v219 = vld [vmem:[#allocation5 + $0x88] sm:$0xff]
        %v220 = vld [vmem:[#allocation5 + $0x90] sm:$0xff]
        %v221 = vld [vmem:[#allocation5 + $0x98] sm:$0xff]
        %v222 = vld [vmem:[#allocation5 + $0xa0] sm:$0xff]
        %v223 = vld [vmem:[#allocation5 + $0xa8] sm:$0xff]
        %v224 = vld [vmem:[#allocation5 + $0xb0] sm:$0xff]
        %v225 = vld [vmem:[#allocation5 + $0xb8] sm:$0xff]
        %v226 = vld [vmem:[#allocation5 + $0xc0] sm:$0xff]
        %v227 = vld [vmem:[#allocation5 + $0xc8] sm:$0xff]
        %v228 = vld [vmem:[#allocation5 + $0xd0] sm:$0xff]
        %v229 = vld [vmem:[#allocation5 + $0xd8] sm:$0xff]
        %v230 = vld [vmem:[#allocation5 + $0xe0] sm:$0xff]
        %v231 = vld [vmem:[#allocation5 + $0xe8] sm:$0xff]
        %v232 = vld [vmem:[#allocation5 + $0xf0] sm:$0xff]
        %v233 = vld [vmem:[#allocation5 + $0xf8] sm:$0xff]
        %234 = vmatprep.subr.mxu0 %v203
        %235 = vmatpush1.msra.mxu0 %v202
        %236 = vmatprep.subr.mxu0 %v205
        %237 = vmatpush1.msra.mxu0 %v204
        %238 = vmatprep.subr.mxu0 %v207
        %239 = vmatpush1.msra.mxu0 %v206
        %240 = vmatprep.subr.mxu0 %v209
        %241 = vmatpush1.msra.mxu0 %v208
        %242 = vmatprep.subr.mxu0 %v211
        %243 = vmatpush1.msra.mxu0 %v210
        %244 = vmatprep.subr.mxu0 %v213
        %245 = vmatpush1.msra.mxu0 %v212
        %246 = vmatprep.subr.mxu0 %v215
        %247 = vmatpush1.msra.mxu0 %v214
        %248 = vmatprep.subr.mxu0 %v217
        %249 = vmatpush1.msra.mxu0 %v216
        %250 = vmatprep.subr.mxu0 %v219
        %251 = vmatpush1.msra.mxu0 %v218
        %252 = vmatprep.subr.mxu0 %v221
        %253 = vmatpush1.msra.mxu0 %v220
        %254 = vmatprep.subr.mxu0 %v223
        %255 = vmatpush1.msra.mxu0 %v222
        %256 = vmatprep.subr.mxu0 %v225
        %257 = vmatpush1.msra.mxu0 %v224
        %258 = vmatprep.subr.mxu0 %v227
        %259 = vmatpush1.msra.mxu0 %v226
        %260 = vmatprep.subr.mxu0 %v229
        %261 = vmatpush1.msra.mxu0 %v228
        %262 = vmatprep.subr.mxu0 %v231
        %263 = vmatpush1.msra.mxu0 %v230
        %264 = vmatprep.subr.mxu0 %v233
        %265 = vmatpush1.msra.mxu0 %v232
        %266 = vmatprep.subr.mxu0 0.0
        %267 = vmatpush1.msra.mxu0 0.0
        %268 = vmatprep.subr.mxu0 0.0
        %269 = vmatpush1.msra.mxu0 0.0
        %270 = vmatprep.subr.mxu0 0.0
        %271 = vmatpush1.msra.mxu0 0.0
        %272 = vmatprep.subr.mxu0 0.0
        %273 = vmatpush1.msra.mxu0 0.0
        %274 = vmatprep.subr.mxu0 0.0
        %275 = vmatpush1.msra.mxu0 0.0
        %276 = vmatprep.subr.mxu0 0.0
        %277 = vmatpush1.msra.mxu0 0.0
        %278 = vmatprep.subr.mxu0 0.0
        %279 = vmatpush1.msra.mxu0 0.0
        %280 = vmatprep.subr.mxu0 0.0
        %281 = vmatpush1.msra.mxu0 0.0
        %282 = vmatprep.subr.mxu0 0.0
        %283 = vmatpush1.msra.mxu0 0.0
        %284 = vmatprep.subr.mxu0 0.0
        %285 = vmatpush1.msra.mxu0 0.0
        %286 = vmatprep.subr.mxu0 0.0
        %287 = vmatpush1.msra.mxu0 0.0
        %288 = vmatprep.subr.mxu0 0.0
        %289 = vmatpush1.msra.mxu0 0.0
        %290 = vmatprep.subr.mxu0 0.0
        %291 = vmatpush1.msra.mxu0 0.0
        %292 = vmatprep.subr.mxu0 0.0
        %293 = vmatpush1.msra.mxu0 0.0
        %294 = vmatprep.subr.mxu0 0.0
        %295 = vmatpush1.msra.mxu0 0.0
        %296 = vmatprep.subr.mxu0 0.0
        %297 = vmatpush1.msra.mxu0 0.0
        %298 = vmatprep.mubr.f32.mxu0 0.0
        %299 = vmatmul.mubr.f32.gmra.mrb[0].mxu0 %v201
        %v300 = vpop.f32.mrb[0].mxu0
        %v301 = vadd.f32 0.0, %v300
        %v302 = vpop.f32.mrb[0].mxu0
        %v303 = vadd.f32 0.0, %v302
        %304 = vdwg.mxu0
        %v305 = vmax.f32 %v303, 0.0
        %v306 = vld [vmem:[%s2] sm:$0x1]
        %vm307 = vcmp.ne.f32.partialorder %v306, 0.0
        %v308 = vmax.f32 %v301, 0.0
        %v309 = vmul.f32 %v301, %v305
        %v310 = vsel %vm307, 1, 0
        %v311 = vlaneseq
        %v312 = vshrl.u32 %v311, 7
        %v313 = vsub.s32 0, %v312
        %v314 = vrot.slane %v310, %v313
        %vm315 = vcmp.eq.s32.totalorder %v314, 1
        %v316 = vsel %vm315, %v308, %v309
        %317 = vst [vmem:[%s200] sm:$0xff] %v316
        %s318 = sand.u32 %s97, 1
        %s319 = scalar_lea.sflag [#allocation4], %s318
        %s320 = sand.u32 %s97, 1
        %s321 = smul.addr %s320, 8
        %s322 = scalar_lea.vmem [#allocation7], %s321
        // Predicated region
        $region41: #{tpu_custom_call.1} parent=31 // pred_check
          %p323 = pneg %p107
        $region42: #{tpu_custom_call.1} parent=31 // pred_check_branch
          %325 = sbr.rel (%p323) target = $region44
        $region43: #{tpu_custom_call.1} parent=31 // pred_region
          %s327 = ssub.s32 128, 128
          %328 = vsyncadd %s319, %s327
          %s329 = smul.addr %s21, 128
          %s330 = scalar_lea.hbm %s3, %s329
          %s332 = sshll.u32 %s322, 4
          %s333 = int_to_ptr.vmem [resolvable:$true] %s332
          %335 = dma.vmem_to_hbm [thread:$0]  %s333, 128, %s330, %s319
        $region44: #{tpu_custom_call.1} parent=31 // pred_fallthru
          _
      $region32: #{tpu_custom_call.1} parent=5 // pred_fallthru
        _
      %p336 = scmp.le.s32.totalorder 2, %s16
      // Predicated region
      $region45: #{tpu_custom_call.1} parent=5 // pred_check
        %p337 = pneg %p336
      $region46: #{tpu_custom_call.1} parent=5 // pred_check_branch
        %339 = sbr.rel (%p337) target = $region48
      $region47: #{tpu_custom_call.1} parent=5 // pred_region
        %s340 = ssub.s32 %s16, 2
        // Predicated region
        $region49: #{tpu_custom_call.1} parent=47 // pred_check
          %p341 = pneg %p113
        $region50: #{tpu_custom_call.1} parent=47 // pred_check_branch
          %343 = sbr.rel (%p341) target = $region52
        $region51: #{tpu_custom_call.1} parent=47 // pred_region
          %s344 = sand.u32 %s98, 1
          %s345 = scalar_lea.sflag [#allocation4], %s344
          %s346 = sand.u32 %s98, 1
          %s347 = smul.addr %s346, 8
          %s348 = scalar_lea.vmem [#allocation7], %s347
          %349 = dma.done %s345, 128
        $region52: #{tpu_custom_call.1} parent=47 // pred_fallthru
          _
      $region48: #{tpu_custom_call.1} parent=5 // pred_fallthru
        _
    $region6: #{tpu_custom_call.1} parent=1 // loop_footer
      %s20 = sadd.s32 1, %s16
    $region7: #{tpu_custom_call.1} parent=1 // loop_footer_branch
      %15 = sbr.rel target = $region3
    $region8: #{tpu_custom_call.1} parent=1 // loop_exit
      _
    %350 = vsyncpa [#allocation3], 1
    %s351 = scalar_lea.sflag [#allocation3], 1
    %352 = vsyncpa %s351, 1
    %353 = vsyncpa [#allocation6], 1
    %354 = vsyncpa [#allocation4], 1
    %s355 = scalar_lea.sflag [#allocation4], 1
    %356 = vsyncpa %s355, 1

</llo_original>
